<compile_context>
chip_gen: v6e
topology: v6e:2x2x1
jax: 0.10.0
libtpu: 0.0.40
codegen_flags: <defaults>
</compile_context>

<pallas_src>
import functools

import numpy as np
import jax
import jax.numpy as jnp
from jax.experimental import pallas as pl
from jax.experimental.pallas import tpu as pltpu

HIDDEN1 = 256
HIDDEN2 = 128
LANES = 128


def _round_up(x, m):
    return ((x + m - 1) // m) * m


def _choose_tb(B):
    """Batch tile: big tiles to amortize per-grid-step overhead, >=2 steps for
    large B (feeds both TensorCores on v7x), MXU-aligned, VMEM-safe on v5e."""
    if B <= 256:
        return _round_up(B, 8)               # single tile for small/eval batches
    tb = _round_up(pl.cdiv(B, 2), 256)       # at least 2 grid steps, 256-aligned
    return min(tb, 2048)                     # ~7 MB footprint at TB=2048


def _value_net_kernel(x_ref, w1_ref, b1_ref, w2_ref, b2_ref, w3_ref, b3_ref,
                      o_ref):
    """Fused 3-layer MLP.  bf16 inputs/weights, f32 accumulation throughout."""
    # Layer 1: relu(x @ W1 + b1)                      -> (TB, 256)
    h1 = jnp.dot(x_ref[...], w1_ref[...], preferred_element_type=jnp.float32)
    h1 = jnp.maximum(h1 + b1_ref[...], 0.0).astype(jnp.bfloat16)
    # Layer 2: relu(h1 @ W2 + b2)                     -> (TB, 128)
    h2 = jnp.dot(h1, w2_ref[...], preferred_element_type=jnp.float32)
    h2 = jnp.maximum(h2 + b2_ref[...], 0.0).astype(jnp.bfloat16)
    # Layer 3: h2 @ W3 + b3 (lane-padded to 128)      -> (TB, n_pad)
    out = jnp.dot(h2, w3_ref[...], preferred_element_type=jnp.float32)
    o_ref[...] = (out + b3_ref[...]).astype(o_ref.dtype)


def prepare_value_network_params(params):
    """One-time preprocessing: bf16 weight casts + lane-pad layer-3 to 128.

    Returns (prepped_arrays_tuple, num_atoms)."""
    w1, b1, w2, b2, w3, b3 = params
    num_atoms = w3.shape[1]
    n_pad = _round_up(num_atoms, LANES)

    w1p = w1.astype(jnp.bfloat16)                                   # (K, 256)
    w2p = w2.astype(jnp.bfloat16)                                   # (256, 128)
    w3p = jnp.pad(w3, ((0, 0), (0, n_pad - num_atoms))).astype(jnp.bfloat16)
    b1p = b1.reshape(1, -1).astype(jnp.float32)
    b2p = b2.reshape(1, -1).astype(jnp.float32)
    b3p = jnp.pad(b3.reshape(1, -1), ((0, 0), (0, n_pad - num_atoms))
                  ).astype(jnp.float32)
    prepped = (w1p, b1p, w2p, b2p, w3p, b3p)
    return jax.tree_util.tree_map(jax.device_put, prepped), num_atoms


@functools.partial(jax.jit, static_argnames=("num_atoms",))
def value_network_forward(state, action, prepped, *, num_atoms):
    """state: (B, num_states), action: (B, num_actions) -> (B, num_atoms) f32."""
    w1, b1, w2, b2, w3p, b3p = prepped

    # Fold the concat here (single K-deep layer-1 MXU push in the kernel).
    x = jnp.concatenate(
        [state.astype(jnp.bfloat16), action.astype(jnp.bfloat16)], axis=1)
    B, K = x.shape
    n_pad = w3p.shape[1]

    TB = _choose_tb(B)
    grid = (pl.cdiv(B, TB),)

    def resident(arr):
        # Constant block index => fetched once, stays VMEM-resident over grid.
        return pl.BlockSpec(arr.shape, lambda i: (0, 0))

    out_full = pl.pallas_call(
        _value_net_kernel,
        out_shape=jax.ShapeDtypeStruct((B, n_pad), jnp.float32),
        grid=grid,
        in_specs=[
            pl.BlockSpec((TB, K), lambda i: (i, 0)),     # activations (batch-tiled)
            resident(w1), resident(b1),
            resident(w2), resident(b2),
            resident(w3p), resident(b3p),
        ],
        out_specs=pl.BlockSpec((TB, n_pad), lambda i: (i, 0)),
        compiler_params=pltpu.CompilerParams(
            dimension_semantics=("parallel",),           # 2 TCs on v7x; no-op elsewhere
            vmem_limit_bytes=32 * 1024 * 1024),          # safe on v5e's 16 MiB default
    )(x, w1, b1, w2, b2, w3p, b3p)

    return out_full[:, :num_atoms]


def init_value_network_params(key, num_states, num_actions, num_atoms,
                              init_w=0.003):
    """Deterministic init mirroring the PyTorch module's __init__.

    linear1/linear2: PyTorch default U(-1/sqrt(fan_in), 1/sqrt(fan_in));
    linear3: U(-init_w, init_w).
    Weights stored (in_features, out_features); biases (1, out).  All f32."""
    d_in = num_states + num_actions
    k1, k2, k3, k4, k5, k6 = jax.random.split(key, 6)

    bound1 = 1.0 / np.sqrt(d_in)
    w1 = jax.random.uniform(k1, (d_in, HIDDEN1), jnp.float32, -bound1, bound1)
    b1 = jax.random.uniform(k2, (1, HIDDEN1), jnp.float32, -bound1, bound1)

    bound2 = 1.0 / np.sqrt(HIDDEN1)
    w2 = jax.random.uniform(k3, (HIDDEN1, HIDDEN2), jnp.float32, -bound2, bound2)
    b2 = jax.random.uniform(k4, (1, HIDDEN2), jnp.float32, -bound2, bound2)

    w3 = jax.random.uniform(k5, (HIDDEN2, num_atoms), jnp.float32, -init_w, init_w)
    b3 = jax.random.uniform(k6, (1, num_atoms), jnp.float32, -init_w, init_w)

    return (w1, b1, w2, b2, w3, b3)


def _reference_bf16(state, action, params, num_atoms):
    """Same math path as the kernel (bf16 storage, f32 accumulation)."""
    w1, b1, w2, b2, w3, b3 = params
    x = jnp.concatenate([state, action], axis=1).astype(jnp.bfloat16)
    h1 = jnp.dot(x, w1.astype(jnp.bfloat16),
                 preferred_element_type=jnp.float32) + b1
    h1 = jnp.maximum(h1, 0.0).astype(jnp.bfloat16)
    h2 = jnp.dot(h1, w2.astype(jnp.bfloat16),
                 preferred_element_type=jnp.float32) + b2
    h2 = jnp.maximum(h2, 0.0).astype(jnp.bfloat16)
    out = jnp.dot(h2, w3.astype(jnp.bfloat16),
                  preferred_element_type=jnp.float32) + b3
    return out[:, :num_atoms]


def _reference_f32(state, action, params, num_atoms):
    """Exact f32 semantics of the original PyTorch forward."""
    w1, b1, w2, b2, w3, b3 = params
    x = jnp.concatenate([state, action], axis=1)
    h1 = jnp.maximum(x @ w1 + b1, 0.0)
    h2 = jnp.maximum(h1 @ w2 + b2, 0.0)
    return (h2 @ w3 + b3)[:, :num_atoms]


if __name__ == "__main__":
    # Small, module-consistent shapes.
    num_states = 24
    num_actions = 8
    num_atoms = 51
    v_min, v_max = -10.0, 10.0

    key = jax.random.PRNGKey(0)
    kp, ks, ka, ks2, ka2 = jax.random.split(key, 5)

    params = init_value_network_params(kp, num_states, num_actions, num_atoms)
    prepped, n_atoms = prepare_value_network_params(params)   # one-time prep

    # z_atoms (distribution support) is plain metadata — lives outside the kernel.
    z_atoms = jnp.linspace(v_min, v_max, num_atoms)

    # ---- Case 1: tiny eval-style batch (single tile). ----
    batch = 8
    state = jax.random.normal(ks, (batch, num_states), jnp.float32)
    action = jax.random.normal(ka, (batch, num_actions), jnp.float32)

    out = value_network_forward(state, action, prepped, num_atoms=n_atoms)
    out = jax.block_until_ready(out)
    assert out.shape == (batch, num_atoms)

    ref_b = _reference_bf16(state, action, params, num_atoms)
    ref_f = _reference_f32(state, action, params, num_atoms)
    np.testing.assert_allclose(np.asarray(out), np.asarray(ref_b),
                               rtol=1e-3, atol=1e-3)
    np.testing.assert_allclose(np.asarray(out), np.asarray(ref_f),
                               rtol=5e-2, atol=5e-3)

    # ---- Case 2: larger batch (multi-step grid + partial last tile). ----
    batch2 = 640   # -> TB=512, grid=(2,), last tile masked (128 valid rows)
    state2 = jax.random.normal(ks2, (batch2, num_states), jnp.float32)
    action2 = jax.random.normal(ka2, (batch2, num_actions), jnp.float32)

    out2 = value_network_forward(state2, action2, prepped, num_atoms=n_atoms)
    out2 = jax.block_until_ready(out2)
    assert out2.shape == (batch2, num_atoms)

    ref2_b = _reference_bf16(state2, action2, params, num_atoms)
    np.testing.assert_allclose(np.asarray(out2), np.asarray(ref2_b),
                               rtol=1e-3, atol=1e-3)

    print("KERNEL_OK")
</pallas_src>

<mosaic_0001>
module attributes {stable_mosaic.version = 11 : i64} {
  func.func @_value_net_kernel(%arg0: i32, %arg1: memref<8x32xbf16, #tpu.memory_space<vmem>>, %arg2: memref<32x256xbf16, #tpu.memory_space<vmem>>, %arg3: memref<1x256xf32, #tpu.memory_space<vmem>>, %arg4: memref<256x128xbf16, #tpu.memory_space<vmem>>, %arg5: memref<1x128xf32, #tpu.memory_space<vmem>>, %arg6: memref<128x128xbf16, #tpu.memory_space<vmem>>, %arg7: memref<1x128xf32, #tpu.memory_space<vmem>>, %arg8: memref<8x128xf32, #tpu.memory_space<vmem>>) attributes {dimension_semantics = [#tpu.dimension_semantics<parallel>], iteration_bounds = array<i64: 1>, scalar_prefetch = 0 : i64, scratch_operands = 0 : i64, tpu.core_type = #tpu.core_type<tc>, window_params = [{transform_indices = @transform_0, window_bounds = array<i64: 8, 32>}, {pipeline_mode = #tpu.pipeline_mode<synchronous>, transform_indices = @transform_1, window_bounds = array<i64: 32, 256>}, {pipeline_mode = #tpu.pipeline_mode<synchronous>, transform_indices = @transform_2, window_bounds = array<i64: 1, 256>}, {pipeline_mode = #tpu.pipeline_mode<synchronous>, transform_indices = @transform_3, window_bounds = array<i64: 256, 128>}, {pipeline_mode = #tpu.pipeline_mode<synchronous>, transform_indices = @transform_4, window_bounds = array<i64: 1, 128>}, {pipeline_mode = #tpu.pipeline_mode<synchronous>, transform_indices = @transform_5, window_bounds = array<i64: 128, 128>}, {pipeline_mode = #tpu.pipeline_mode<synchronous>, transform_indices = @transform_6, window_bounds = array<i64: 1, 128>}, {transform_indices = @transform_7, window_bounds = array<i64: 8, 128>}]} {
    %c0 = arith.constant 0 : index
    %c0_0 = arith.constant 0 : index
    %0 = vector.load %arg1[%c0, %c0_0] : memref<8x32xbf16, #tpu.memory_space<vmem>>, vector<8x32xbf16>
    %c0_1 = arith.constant 0 : index
    %c0_2 = arith.constant 0 : index
    %1 = vector.load %arg2[%c0_1, %c0_2] : memref<32x256xbf16, #tpu.memory_space<vmem>>, vector<32x256xbf16>
    %cst = arith.constant dense<0.000000e+00> : vector<8x256xf32>
    %2 = tpu.matmul %0, %1, %cst {dimension_numbers = #tpu.dot_dimension_numbers<[1], [0], [0], [1], [0, 0, 1, 1], [], []>} : vector<8x32xbf16>, vector<32x256xbf16>, vector<8x256xf32> -> vector<8x256xf32>
    %c0_3 = arith.constant 0 : index
    %c0_4 = arith.constant 0 : index
    %3 = vector.load %arg3[%c0_3, %c0_4] : memref<1x256xf32, #tpu.memory_space<vmem>>, vector<1x256xf32>
    %4 = vector.broadcast %3 : vector<1x256xf32> to vector<8x256xf32>
    %5 = arith.addf %2, %4 : vector<8x256xf32>
    %cst_5 = arith.constant 0.000000e+00 : f32
    %6 = vector.broadcast %cst_5 : f32 to vector<8x256xf32>
    %7 = arith.maximumf %5, %6 : vector<8x256xf32>
    %8 = arith.truncf %7 : vector<8x256xf32> to vector<8x256xbf16>
    %c0_6 = arith.constant 0 : index
    %c0_7 = arith.constant 0 : index
    %9 = vector.load %arg4[%c0_6, %c0_7] : memref<256x128xbf16, #tpu.memory_space<vmem>>, vector<256x128xbf16>
    %cst_8 = arith.constant dense<0.000000e+00> : vector<8x128xf32>
    %10 = tpu.matmul %8, %9, %cst_8 {dimension_numbers = #tpu.dot_dimension_numbers<[1], [0], [0], [1], [0, 0, 1, 1], [], []>} : vector<8x256xbf16>, vector<256x128xbf16>, vector<8x128xf32> -> vector<8x128xf32>
    %c0_9 = arith.constant 0 : index
    %c0_10 = arith.constant 0 : index
    %11 = vector.load %arg5[%c0_9, %c0_10] : memref<1x128xf32, #tpu.memory_space<vmem>>, vector<1x128xf32>
    %12 = vector.broadcast %11 : vector<1x128xf32> to vector<8x128xf32>
    %13 = arith.addf %10, %12 : vector<8x128xf32>
    %cst_11 = arith.constant 0.000000e+00 : f32
    %14 = vector.broadcast %cst_11 : f32 to vector<8x128xf32>
    %15 = arith.maximumf %13, %14 : vector<8x128xf32>
    %16 = arith.truncf %15 : vector<8x128xf32> to vector<8x128xbf16>
    %c0_12 = arith.constant 0 : index
    %c0_13 = arith.constant 0 : index
    %17 = vector.load %arg6[%c0_12, %c0_13] : memref<128x128xbf16, #tpu.memory_space<vmem>>, vector<128x128xbf16>
    %cst_14 = arith.constant dense<0.000000e+00> : vector<8x128xf32>
    %18 = tpu.matmul %16, %17, %cst_14 {dimension_numbers = #tpu.dot_dimension_numbers<[1], [0], [0], [1], [0, 0, 1, 1], [], []>} : vector<8x128xbf16>, vector<128x128xbf16>, vector<8x128xf32> -> vector<8x128xf32>
    %c0_15 = arith.constant 0 : index
    %c0_16 = arith.constant 0 : index
    %19 = vector.load %arg7[%c0_15, %c0_16] : memref<1x128xf32, #tpu.memory_space<vmem>>, vector<1x128xf32>
    %20 = vector.broadcast %19 : vector<1x128xf32> to vector<8x128xf32>
    %21 = arith.addf %18, %20 : vector<8x128xf32>
    %c0_17 = arith.constant 0 : index
    %c0_18 = arith.constant 0 : index
    %22 = vector.load %arg8[%c0_17, %c0_18] : memref<8x128xf32, #tpu.memory_space<vmem>>, vector<8x128xf32>
    tpu.vector_store %arg8[%c0_17, %c0_18], %21 {strides = array<i32>} : memref<8x128xf32, #tpu.memory_space<vmem>>, vector<8x128xf32>,
    return
  }
  func.func @transform_0(%arg0: i32) -> (i32, i32) {
    %c0_i32 = arith.constant 0 : i32
    %c0_i32_0 = arith.constant 0 : i32
    return %arg0, %c0_i32 : i32, i32
  }
  func.func @transform_1(%arg0: i32) -> (i32, i32) {
    %c0_i32 = arith.constant 0 : i32
    %c0_i32_0 = arith.constant 0 : i32
    %c0_i32_1 = arith.constant 0 : i32
    return %c0_i32, %c0_i32_0 : i32, i32
  }
  func.func @transform_2(%arg0: i32) -> (i32, i32) {
    %c0_i32 = arith.constant 0 : i32
    %c0_i32_0 = arith.constant 0 : i32
    %c0_i32_1 = arith.constant 0 : i32
    return %c0_i32, %c0_i32_0 : i32, i32
  }
  func.func @transform_3(%arg0: i32) -> (i32, i32) {
    %c0_i32 = arith.constant 0 : i32
    %c0_i32_0 = arith.constant 0 : i32
    %c0_i32_1 = arith.constant 0 : i32
    return %c0_i32, %c0_i32_0 : i32, i32
  }
  func.func @transform_4(%arg0: i32) -> (i32, i32) {
    %c0_i32 = arith.constant 0 : i32
    %c0_i32_0 = arith.constant 0 : i32
    %c0_i32_1 = arith.constant 0 : i32
    return %c0_i32, %c0_i32_0 : i32, i32
  }
  func.func @transform_5(%arg0: i32) -> (i32, i32) {
    %c0_i32 = arith.constant 0 : i32
    %c0_i32_0 = arith.constant 0 : i32
    %c0_i32_1 = arith.constant 0 : i32
    return %c0_i32, %c0_i32_0 : i32, i32
  }
  func.func @transform_6(%arg0: i32) -> (i32, i32) {
    %c0_i32 = arith.constant 0 : i32
    %c0_i32_0 = arith.constant 0 : i32
    %c0_i32_1 = arith.constant 0 : i32
    return %c0_i32, %c0_i32_0 : i32, i32
  }
  func.func @transform_7(%arg0: i32) -> (i32, i32) {
    %c0_i32 = arith.constant 0 : i32
    %c0_i32_0 = arith.constant 0 : i32
    return %arg0, %c0_i32 : i32, i32
  }
}

</mosaic_0001>

<llo_original>
// kernel: value_network_forward.1
$region0: #{value_network_forward.1}
  #allocation0 [shape = 'u32[]', space=smem, size = 0x4, offset = 0x4, fixed_abs, tag = 'smem constant byte address 0x4 - core index']
  #allocation1 [shape = 'u32[144,128]{1,0:T(1,128)}', space=vmem, size = 0x12000, scoped, tag = 'internal scratch']
  %s0 = inlined_call_operand.vmem [shape: bf16[8,32], index: 0, kind: input, shape index: {}]
  %s1 = inlined_call_operand.vmem [shape: bf16[32,256], index: 1, kind: input, shape index: {}]
  %s2 = inlined_call_operand.vmem [shape: f32[1,256], index: 2, kind: input, shape index: {}]
  %s3 = inlined_call_operand.hbm [shape: bf16[256,128], index: 3, kind: input, shape index: {}]
  %s4 = inlined_call_operand.vmem [shape: f32[1,128], index: 4, kind: input, shape index: {}]
  %s5 = inlined_call_operand.hbm [shape: bf16[128,128], index: 5, kind: input, shape index: {}]
  %s6 = inlined_call_operand.vmem [shape: f32[1,128], index: 6, kind: input, shape index: {}]
  %s7 = inlined_call_operand.hbm [shape: f32[8,128], index: 7, kind: output, shape index: {}]
  %s8 = sld [smem:[#allocation0]]
  $region46: #{value_network_forward.1} parent=0
    _
  %s10 = ssub.s32 1, %s8
  %s11 = scalar_select 0, %s10, %s8
  $region1: #{value_network_forward.1} parent=0
    #allocation2 [shape = 'u8[65536]{0}', space=vmem, size = 0x10000, scoped, tag = 'input window, operand 3, single buffered']
    #allocation3 [shape = 's32[1]{0}', space=sflag, size = 0x4, scoped, tag = 'scoped memory for value_network_forward.1']
    #allocation4 [shape = 's32[1]{0}', space=sflag, size = 0x4, scoped, tag = 'scoped memory for value_network_forward.1']
    #allocation5 [shape = 'u8[32768]{0}', space=vmem, size = 0x8000, scoped, tag = 'input window, operand 5, single buffered']
    #allocation6 [shape = 's32[1]{0}', space=sflag, size = 0x4, scoped, tag = 'scoped memory for value_network_forward.1']
    #allocation7 [shape = 'u8[4096]{0}', space=vmem, size = 0x1000, scoped, tag = 'output window, operand 0, single buffered']
    %12 = vsyncpa [#allocation3], 0
    %13 = vsyncpa [#allocation6], 0
    %14 = vsyncpa [#allocation4], 0
    // Predicated region
    $region2: #{value_network_forward.1} parent=1 // pred_check
      _
    $region3: #{value_network_forward.1} parent=1 // pred_check_branch
      %16 = sbr.rel (0) target = $region5
    $region4: #{value_network_forward.1} parent=1 // pred_region
      _
    $region5: #{value_network_forward.1} parent=1 // pred_fallthru
      _
    // Predicated region
    $region6: #{value_network_forward.1} parent=1 // pred_check
      _
    $region7: #{value_network_forward.1} parent=1 // pred_check_branch
      %18 = sbr.rel (0) target = $region9
    $region8: #{value_network_forward.1} parent=1 // pred_region
      _
    $region9: #{value_network_forward.1} parent=1 // pred_fallthru
      _
    // Predicated region
    $region10: #{value_network_forward.1} parent=1 // pred_check
      _
    $region11: #{value_network_forward.1} parent=1 // pred_check_branch
      %20 = sbr.rel (0) target = $region13
    $region12: #{value_network_forward.1} parent=1 // pred_region
      _
    $region13: #{value_network_forward.1} parent=1 // pred_fallthru
      _
    // Predicated region
    $region14: #{value_network_forward.1} parent=1 // pred_check
      _
    $region15: #{value_network_forward.1} parent=1 // pred_check_branch
      %22 = sbr.rel (0) target = $region17
    $region16: #{value_network_forward.1} parent=1 // pred_region
      %s24 = ssub.s32 2048, 2048
      %25 = vsyncadd [#allocation3], %s24
      %s26 = sshll.u32 [#allocation2], 4
      %s27 = int_to_ptr.vmem [resolvable:$true] %s26
      %32 = dma.hbm_to_vmem [thread:$0]  %s3, 2048, %s27, [#allocation3], 64, 64, 4
    $region17: #{value_network_forward.1} parent=1 // pred_fallthru
      _
    // Predicated region
    $region18: #{value_network_forward.1} parent=1 // pred_check
      _
    $region19: #{value_network_forward.1} parent=1 // pred_check_branch
      %34 = sbr.rel (0) target = $region21
    $region20: #{value_network_forward.1} parent=1 // pred_region
      _
    $region21: #{value_network_forward.1} parent=1 // pred_fallthru
      _
    // Predicated region
    $region22: #{value_network_forward.1} parent=1 // pred_check
      _
    $region23: #{value_network_forward.1} parent=1 // pred_check_branch
      %36 = sbr.rel (0) target = $region25
    $region24: #{value_network_forward.1} parent=1 // pred_region
      %s38 = ssub.s32 1024, 1024
      %39 = vsyncadd [#allocation6], %s38
      %s40 = sshll.u32 [#allocation5], 4
      %s41 = int_to_ptr.vmem [resolvable:$true] %s40
      %46 = dma.hbm_to_vmem [thread:$0]  %s5, 1024, %s41, [#allocation6], 64, 64, 4
    $region25: #{value_network_forward.1} parent=1 // pred_fallthru
      _
    // Predicated region
    $region26: #{value_network_forward.1} parent=1 // pred_check
      _
    $region27: #{value_network_forward.1} parent=1 // pred_check_branch
      %48 = sbr.rel (0) target = $region29
    $region28: #{value_network_forward.1} parent=1 // pred_region
      _
    $region29: #{value_network_forward.1} parent=1 // pred_fallthru
      _
    // Predicated region
    $region30: #{value_network_forward.1} parent=1 // pred_check
      _
    $region31: #{value_network_forward.1} parent=1 // pred_check_branch
      %50 = sbr.rel (0) target = $region33
    $region32: #{value_network_forward.1} parent=1 // pred_region
      %51 = dma.done [#allocation3], 2048
    $region33: #{value_network_forward.1} parent=1 // pred_fallthru
      _
    // Predicated region
    $region34: #{value_network_forward.1} parent=1 // pred_check
      _
    $region35: #{value_network_forward.1} parent=1 // pred_check_branch
      %53 = sbr.rel (0) target = $region37
    $region36: #{value_network_forward.1} parent=1 // pred_region
      %54 = dma.done [#allocation6], 1024
    $region37: #{value_network_forward.1} parent=1 // pred_fallthru
      _
    %v56 = vld [vmem:[%s0] sm:$0xf]
    %v57 = vld [vmem:[%s1] sm:$0xff]
    %v58 = vld [vmem:[%s1 + $0x8] sm:$0xff]
    %v59 = vld [vmem:[%s1 + $0x10] sm:$0xff]
    %v60 = vld [vmem:[%s1 + $0x18] sm:$0xff]
    %v61 = vld [vmem:[%s2] sm:$0x3]
    %v63 = vlaneseq
    %v64 = vshrl.u32 %v63, 7
    %v65 = vsub.s32 0, %v64
    %v66 = vrot.slane %v61, %v65
    %v67 = vlaneseq
    %v68 = vshrl.u32 %v67, 7
    %v69 = vsub.s32 1, %v68
    %v70 = vrot.slane %v61, %v69
    %v77 = vunpack.c.l.b16 %v57
    %v78 = vunpack.c.h.b16 %v57
    %v79 = vunpack.c.l.b16 %v58
    %v80 = vunpack.c.h.b16 %v58
    %v81 = vunpack.c.l.b16 %v59
    %v82 = vunpack.c.h.b16 %v59
    %v83 = vunpack.c.l.b16 %v60
    %v84 = vunpack.c.h.b16 %v60
    %v85 = vpack.c.b16 %v79, %v77
    %v86 = vpack.c.b16 %v80, %v78
    %v87 = vpack.c.b16 %v83, %v81
    %v88 = vpack.c.b16 %v84, %v82
    %vm93 = vcmask 261120
    %v95 = vsel %vm93, %v56, 0
    %97 = vmatprep.subr.bf16.mxu0 0
    %98 = vmatpush1.bf16.msra.mxu0 0
    %99 = vmatprep.subr.bf16.mxu0 0
    %100 = vmatpush1.bf16.msra.mxu0 0
    %101 = vmatprep.subr.bf16.mxu0 0
    %102 = vmatpush1.bf16.msra.mxu0 0
    %103 = vmatprep.subr.bf16.mxu0 0
    %104 = vmatpush1.bf16.msra.mxu0 0
    %105 = vmatprep.subr.bf16.mxu0 0
    %106 = vmatpush1.bf16.msra.mxu0 0
    %107 = vmatprep.subr.bf16.mxu0 0
    %108 = vmatpush1.bf16.msra.mxu0 0
    %109 = vmatprep.subr.bf16.mxu0 %v88
    %110 = vmatpush1.bf16.msra.mxu0 %v87
    %111 = vmatprep.subr.bf16.mxu0 %v86
    %112 = vmatpush1.bf16.msra.mxu0 %v85
    %113 = vmatprep.subr.bf16.mxu0 0
    %114 = vmatpush2.bf16.msra.mxu0 0
    %115 = vmatprep.subr.bf16.mxu0 0
    %116 = vmatpush2.bf16.msra.mxu0 0
    %117 = vmatprep.subr.bf16.mxu0 0
    %118 = vmatpush2.bf16.msra.mxu0 0
    %119 = vmatprep.subr.bf16.mxu0 0
    %120 = vmatpush2.bf16.msra.mxu0 0
    %121 = vmatprep.subr.bf16.mxu0 0
    %122 = vmatpush2.bf16.msra.mxu0 0
    %123 = vmatprep.subr.bf16.mxu0 0
    %124 = vmatpush2.bf16.msra.mxu0 0
    %125 = vmatprep.subr.bf16.mxu0 0
    %126 = vmatpush2.bf16.msra.mxu0 0
    %127 = vmatprep.subr.bf16.mxu0 0
    %128 = vmatpush2.bf16.msra.mxu0 0
    %129 = vmatprep.mubr.bf16.mxu0 0
    %130 = vmatmul.mubr.bf16.gmra.mxu0 %v95
    %v131 = vpop.f32.mrf.mxu0
    %v132 = vadd.f32 %v66, %v131
    %v133 = vpop.f32.mrf.mxu0
    %v134 = vadd.f32 %v70, %v133
    %v135 = vpop.f32.mrf.mxu0
    %v136 = vpop.f32.mrf.mxu0
    %137 = vdwg.mxu0
    %v138 = vmax.f32 %v132, 0.0
    %v139 = vmax.f32 %v134, 0.0
    %v140 = vpack.c.bf16 %v138, %v138
    %v141 = vpack.c.bf16 %v139, %v139
    %v142 = vld [vmem:[#allocation2] sm:$0xf]
    %v143 = vld [vmem:[#allocation2 + $0x4] sm:$0xf]
    %v144 = vld [vmem:[#allocation2 + $0x8] sm:$0xf]
    %v145 = vld [vmem:[#allocation2 + $0xc] sm:$0xf]
    %v146 = vld [vmem:[#allocation2 + $0x10] sm:$0xf]
    %v147 = vld [vmem:[#allocation2 + $0x14] sm:$0xf]
    %v148 = vld [vmem:[#allocation2 + $0x18] sm:$0xf]
    %v149 = vld [vmem:[#allocation2 + $0x1c] sm:$0xf]
    %v150 = vld [vmem:[#allocation2 + $0x20] sm:$0xf]
    %v151 = vld [vmem:[#allocation2 + $0x24] sm:$0xf]
    %v152 = vld [vmem:[#allocation2 + $0x28] sm:$0xf]
    %v153 = vld [vmem:[#allocation2 + $0x2c] sm:$0xf]
    %v154 = vld [vmem:[#allocation2 + $0x30] sm:$0xf]
    %v155 = vld [vmem:[#allocation2 + $0x34] sm:$0xf]
    %v156 = vld [vmem:[#allocation2 + $0x38] sm:$0xf]
    %v157 = vld [vmem:[#allocation2 + $0x3c] sm:$0xf]
    %v158 = vld [vmem:[#allocation2 + $0x40] sm:$0xf]
    %v159 = vld [vmem:[#allocation2 + $0x44] sm:$0xf]
    %v160 = vld [vmem:[#allocation2 + $0x48] sm:$0xf]
    %v161 = vld [vmem:[#allocation2 + $0x4c] sm:$0xf]
    %v162 = vld [vmem:[#allocation2 + $0x50] sm:$0xf]
    %v163 = vld [vmem:[#allocation2 + $0x54] sm:$0xf]
    %v164 = vld [vmem:[#allocation2 + $0x58] sm:$0xf]
    %v165 = vld [vmem:[#allocation2 + $0x5c] sm:$0xf]
    %v166 = vld [vmem:[#allocation2 + $0x60] sm:$0xf]
    %v167 = vld [vmem:[#allocation2 + $0x64] sm:$0xf]
    %v168 = vld [vmem:[#allocation2 + $0x68] sm:$0xf]
    %v169 = vld [vmem:[#allocation2 + $0x6c] sm:$0xf]
    %v170 = vld [vmem:[#allocation2 + $0x70] sm:$0xf]
    %v171 = vld [vmem:[#allocation2 + $0x74] sm:$0xf]
    %v172 = vld [vmem:[#allocation2 + $0x78] sm:$0xf]
    %v173 = vld [vmem:[#allocation2 + $0x7c] sm:$0xf]
    %v174 = vld [vmem:[%s4] sm:$0x1]
    %v176 = vlaneseq
    %v177 = vshrl.u32 %v176, 7
    %v178 = vsub.s32 0, %v177
    %v179 = vrot.slane %v174, %v178
    %v213 = vunpack.c.l.b16 %v142
    %v214 = vunpack.c.l.b16 %v143
    %v215 = vunpack.c.l.b16 %v144
    %v216 = vunpack.c.l.b16 %v145
    %v217 = vunpack.c.l.b16 %v146
    %v218 = vunpack.c.l.b16 %v147
    %v219 = vunpack.c.l.b16 %v148
    %v220 = vunpack.c.l.b16 %v149
    %v221 = vunpack.c.l.b16 %v150
    %v222 = vunpack.c.l.b16 %v151
    %v223 = vunpack.c.l.b16 %v152
    %v224 = vunpack.c.l.b16 %v153
    %v225 = vunpack.c.l.b16 %v154
    %v226 = vunpack.c.l.b16 %v155
    %v227 = vunpack.c.l.b16 %v156
    %v228 = vunpack.c.l.b16 %v157
    %v229 = vunpack.c.l.b16 %v158
    %v230 = vunpack.c.l.b16 %v159
    %v231 = vunpack.c.l.b16 %v160
    %v232 = vunpack.c.l.b16 %v161
    %v233 = vunpack.c.l.b16 %v162
    %v234 = vunpack.c.l.b16 %v163
    %v235 = vunpack.c.l.b16 %v164
    %v236 = vunpack.c.l.b16 %v165
    %v237 = vunpack.c.l.b16 %v166
    %v238 = vunpack.c.l.b16 %v167
    %v239 = vunpack.c.l.b16 %v168
    %v240 = vunpack.c.l.b16 %v169
    %v241 = vunpack.c.l.b16 %v170
    %v242 = vunpack.c.l.b16 %v171
    %v243 = vunpack.c.l.b16 %v172
    %v244 = vunpack.c.l.b16 %v173
    %v245 = vpack.c.b16 %v214, %v213
    %v246 = vpack.c.b16 %v216, %v215
    %v247 = vpack.c.b16 %v218, %v217
    %v248 = vpack.c.b16 %v220, %v219
    %v249 = vpack.c.b16 %v222, %v221
    %v250 = vpack.c.b16 %v224, %v223
    %v251 = vpack.c.b16 %v226, %v225
    %v252 = vpack.c.b16 %v228, %v227
    %v253 = vpack.c.b16 %v230, %v229
    %v254 = vpack.c.b16 %v232, %v231
    %v255 = vpack.c.b16 %v234, %v233
    %v256 = vpack.c.b16 %v236, %v235
    %v257 = vpack.c.b16 %v238, %v237
    %v258 = vpack.c.b16 %v240, %v239
    %v259 = vpack.c.b16 %v242, %v241
    %v260 = vpack.c.b16 %v244, %v243
    %277 = vmatprep.subr.bf16.mxu0 0
    %278 = vmatpush1.bf16.msra.mxu0 %v252
    %279 = vmatprep.subr.bf16.mxu0 0
    %280 = vmatpush1.bf16.msra.mxu0 %v251
    %281 = vmatprep.subr.bf16.mxu0 0
    %282 = vmatpush1.bf16.msra.mxu0 %v250
    %283 = vmatprep.subr.bf16.mxu0 0
    %284 = vmatpush1.bf16.msra.mxu0 %v249
    %285 = vmatprep.subr.bf16.mxu0 0
    %286 = vmatpush1.bf16.msra.mxu0 %v248
    %287 = vmatprep.subr.bf16.mxu0 0
    %288 = vmatpush1.bf16.msra.mxu0 %v247
    %289 = vmatprep.subr.bf16.mxu0 0
    %290 = vmatpush1.bf16.msra.mxu0 %v246
    %291 = vmatprep.subr.bf16.mxu0 0
    %292 = vmatpush1.bf16.msra.mxu0 %v245
    %293 = vmatprep.subr.bf16.mxu0 0
    %294 = vmatpush2.bf16.msra.mxu0 %v260
    %295 = vmatprep.subr.bf16.mxu0 0
    %296 = vmatpush2.bf16.msra.mxu0 %v259
    %297 = vmatprep.subr.bf16.mxu0 0
    %298 = vmatpush2.bf16.msra.mxu0 %v258
    %299 = vmatprep.subr.bf16.mxu0 0
    %300 = vmatpush2.bf16.msra.mxu0 %v257
    %301 = vmatprep.subr.bf16.mxu0 0
    %302 = vmatpush2.bf16.msra.mxu0 %v256
    %303 = vmatprep.subr.bf16.mxu0 0
    %304 = vmatpush2.bf16.msra.mxu0 %v255
    %305 = vmatprep.subr.bf16.mxu0 0
    %306 = vmatpush2.bf16.msra.mxu0 %v254
    %307 = vmatprep.subr.bf16.mxu0 0
    %308 = vmatpush2.bf16.msra.mxu0 %v253
    %309 = vmatprep.mubr.bf16.mxu0 %v141
    %310 = vmatmul.mubr.bf16.gmra.mxu0 %v140
    %v311 = vpop.f32.mrf.mxu0
    %v312 = vadd.f32 %v179, %v311
    %v313 = vpop.f32.mrf.mxu0
    %v314 = vpop.f32.mrf.mxu0
    %v315 = vpop.f32.mrf.mxu0
    %316 = vdwg.mxu0
    %v317 = vmax.f32 %v312, 0.0
    %v318 = vpack.c.bf16 %v317, %v317
    %v319 = vld [vmem:[#allocation5] sm:$0xf]
    %v320 = vld [vmem:[#allocation5 + $0x4] sm:$0xf]
    %v321 = vld [vmem:[#allocation5 + $0x8] sm:$0xf]
    %v322 = vld [vmem:[#allocation5 + $0xc] sm:$0xf]
    %v323 = vld [vmem:[#allocation5 + $0x10] sm:$0xf]
    %v324 = vld [vmem:[#allocation5 + $0x14] sm:$0xf]
    %v325 = vld [vmem:[#allocation5 + $0x18] sm:$0xf]
    %v326 = vld [vmem:[#allocation5 + $0x1c] sm:$0xf]
    %v327 = vld [vmem:[#allocation5 + $0x20] sm:$0xf]
    %v328 = vld [vmem:[#allocation5 + $0x24] sm:$0xf]
    %v329 = vld [vmem:[#allocation5 + $0x28] sm:$0xf]
    %v330 = vld [vmem:[#allocation5 + $0x2c] sm:$0xf]
    %v331 = vld [vmem:[#allocation5 + $0x30] sm:$0xf]
    %v332 = vld [vmem:[#allocation5 + $0x34] sm:$0xf]
    %v333 = vld [vmem:[#allocation5 + $0x38] sm:$0xf]
    %v334 = vld [vmem:[#allocation5 + $0x3c] sm:$0xf]
    %v335 = vld [vmem:[%s6] sm:$0x1]
    %v337 = vlaneseq
    %v338 = vshrl.u32 %v337, 7
    %v339 = vsub.s32 0, %v338
    %v340 = vrot.slane %v335, %v339
    %v358 = vunpack.c.l.b16 %v319
    %v359 = vunpack.c.l.b16 %v320
    %v360 = vunpack.c.l.b16 %v321
    %v361 = vunpack.c.l.b16 %v322
    %v362 = vunpack.c.l.b16 %v323
    %v363 = vunpack.c.l.b16 %v324
    %v364 = vunpack.c.l.b16 %v325
    %v365 = vunpack.c.l.b16 %v326
    %v366 = vunpack.c.l.b16 %v327
    %v367 = vunpack.c.l.b16 %v328
    %v368 = vunpack.c.l.b16 %v329
    %v369 = vunpack.c.l.b16 %v330
    %v370 = vunpack.c.l.b16 %v331
    %v371 = vunpack.c.l.b16 %v332
    %v372 = vunpack.c.l.b16 %v333
    %v373 = vunpack.c.l.b16 %v334
    %v374 = vpack.c.b16 %v359, %v358
    %v375 = vpack.c.b16 %v361, %v360
    %v376 = vpack.c.b16 %v363, %v362
    %v377 = vpack.c.b16 %v365, %v364
    %v378 = vpack.c.b16 %v367, %v366
    %v379 = vpack.c.b16 %v369, %v368
    %v380 = vpack.c.b16 %v371, %v370
    %v381 = vpack.c.b16 %v373, %v372
    %390 = vmatprep.subr.bf16.mxu0 0
    %391 = vmatpush1.bf16.msra.mxu0 %v381
    %392 = vmatprep.subr.bf16.mxu0 0
    %393 = vmatpush1.bf16.msra.mxu0 %v380
    %394 = vmatprep.subr.bf16.mxu0 0
    %395 = vmatpush1.bf16.msra.mxu0 %v379
    %396 = vmatprep.subr.bf16.mxu0 0
    %397 = vmatpush1.bf16.msra.mxu0 %v378
    %398 = vmatprep.subr.bf16.mxu0 0
    %399 = vmatpush1.bf16.msra.mxu0 %v377
    %400 = vmatprep.subr.bf16.mxu0 0
    %401 = vmatpush1.bf16.msra.mxu0 %v376
    %402 = vmatprep.subr.bf16.mxu0 0
    %403 = vmatpush1.bf16.msra.mxu0 %v375
    %404 = vmatprep.subr.bf16.mxu0 0
    %405 = vmatpush1.bf16.msra.mxu0 %v374
    %406 = vmatprep.subr.bf16.mxu0 0
    %407 = vmatpush2.bf16.msra.mxu0 0
    %408 = vmatprep.subr.bf16.mxu0 0
    %409 = vmatpush2.bf16.msra.mxu0 0
    %410 = vmatprep.subr.bf16.mxu0 0
    %411 = vmatpush2.bf16.msra.mxu0 0
    %412 = vmatprep.subr.bf16.mxu0 0
    %413 = vmatpush2.bf16.msra.mxu0 0
    %414 = vmatprep.subr.bf16.mxu0 0
    %415 = vmatpush2.bf16.msra.mxu0 0
    %416 = vmatprep.subr.bf16.mxu0 0
    %417 = vmatpush2.bf16.msra.mxu0 0
    %418 = vmatprep.subr.bf16.mxu0 0
    %419 = vmatpush2.bf16.msra.mxu0 0
    %420 = vmatprep.subr.bf16.mxu0 0
    %421 = vmatpush2.bf16.msra.mxu0 0
    %422 = vmatprep.mubr.bf16.mxu0 0
    %423 = vmatmul.mubr.bf16.gmra.mxu0 %v318
    %v424 = vpop.f32.mrf.mxu0
    %v425 = vadd.f32 %v340, %v424
    %v426 = vpop.f32.mrf.mxu0
    %v427 = vpop.f32.mrf.mxu0
    %v428 = vpop.f32.mrf.mxu0
    %429 = vdwg.mxu0
    %430 = vst [vmem:[#allocation7] sm:$0xff] %v425
    // Predicated region
    $region38: #{value_network_forward.1} parent=1 // pred_check
      _
    $region39: #{value_network_forward.1} parent=1 // pred_check_branch
      %432 = sbr.rel (0) target = $region41
    $region40: #{value_network_forward.1} parent=1 // pred_region
      %s434 = ssub.s32 128, 128
      %435 = vsyncadd [#allocation4], %s434
      %s437 = sshll.u32 [#allocation7], 4
      %s438 = int_to_ptr.vmem [resolvable:$true] %s437
      %440 = dma.vmem_to_hbm [thread:$0]  %s438, 128, %s7, [#allocation4]
    $region41: #{value_network_forward.1} parent=1 // pred_fallthru
      _
    // Predicated region
    $region42: #{value_network_forward.1} parent=1 // pred_check
      _
    $region43: #{value_network_forward.1} parent=1 // pred_check_branch
      %442 = sbr.rel (0) target = $region45
    $region44: #{value_network_forward.1} parent=1 // pred_region
      %443 = dma.done [#allocation4], 128
    $region45: #{value_network_forward.1} parent=1 // pred_fallthru
      _
    %444 = vsyncpa [#allocation3], 1
    %445 = vsyncpa [#allocation6], 1
    %446 = vsyncpa [#allocation4], 1

</llo_original>
